<compile_context>
chip_gen: v7x
topology: tpu7x:2x2x1
jax: 0.10.0
libtpu: 0.0.40
codegen_flags: <defaults>
</compile_context>

<pallas_src>
import jax
import jax.numpy as jnp
from jax.experimental import pallas as pl
from jax.experimental.pallas import tpu as pltpu

EPS = 1e-5  # nn.LayerNorm default


def _layernorm_kernel(x_ref, g_ref, b_ref, o_ref):
    # x_ref: (row_tile, D) tile; g_ref / b_ref: (1, D) f32 affine params.
    x = x_ref[...].astype(jnp.float32)
    mean = jnp.mean(x, axis=-1, keepdims=True)
    xc = x - mean
    var = jnp.mean(xc * xc, axis=-1, keepdims=True)
    scale = jax.lax.rsqrt(var + EPS) * g_ref[...]      # (rows,1)*(1,D) -> (rows,D)
    o_ref[...] = (xc * scale + b_ref[...]).astype(o_ref.dtype)


def _round_up(n, m):
    return ((n + m - 1) // m) * m


def _device_tuning():
    """Return (target_bytes_per_input_tile, vmem_limit_bytes), generation-aware."""
    cap = None
    try:
        info = pltpu.get_tpu_info()
        cap = int(getattr(info, "vmem_capacity_bytes", 0)) or None
    except Exception:
        cap = None
    if cap is not None and cap >= 100 * 1024 * 1024:
        # v5e / v6e: 128 MiB physical VMEM -> bigger tiles, raise the scoped limit
        # (v5e's default scoped limit is only 16 MiB).
        return 4 << 20, 64 * 1024 * 1024
    # v7x (64 MiB VMEM) or unknown device: conservative, fits everywhere.
    return 2 << 20, 32 * 1024 * 1024


def _pick_row_tile(rows, d, dtype, target_bytes):
    """Pick a row tile ~target_bytes of input traffic, packed for the dtype."""
    itemsize = jnp.dtype(dtype).itemsize
    pack = max(8, (32 // (itemsize * 8)) * 8)          # 8 for f32, 16 for bf16, 32 for i8
    target = max(pack, (target_bytes // max(1, d * itemsize)) // pack * pack)
    # Don't allocate a block bigger than the (packed-rounded) problem itself.
    return int(min(target, _round_up(rows, pack)))


def layernorm_pallas(x, gamma, beta, *, row_tile=None):
    """LayerNorm over the last dim of x (matches torch.nn.LayerNorm(dim))."""
    orig_shape = x.shape
    D = orig_shape[-1]
    x2 = x.reshape(-1, D)
    R = x2.shape[0]

    target_bytes, vmem_limit = _device_tuning()
    if row_tile is None:
        row_tile = _pick_row_tile(R, D, x.dtype, target_bytes)

    # Pre-cast affine params to f32 once (not per grid step inside the kernel).
    g2 = gamma.reshape(1, D).astype(jnp.float32)
    b2 = beta.reshape(1, D).astype(jnp.float32)

    def build(dim_sem):
        return pl.pallas_call(
            _layernorm_kernel,
            out_shape=jax.ShapeDtypeStruct((R, D), x.dtype),
            grid=(pl.cdiv(R, row_tile),),
            in_specs=[
                pl.BlockSpec((row_tile, D), lambda i: (i, 0)),
                pl.BlockSpec((1, D), lambda i: (0, 0)),   # loop-invariant, resident
                pl.BlockSpec((1, D), lambda i: (0, 0)),
            ],
            out_specs=pl.BlockSpec((row_tile, D), lambda i: (i, 0)),
            compiler_params=pltpu.CompilerParams(
                dimension_semantics=dim_sem,
                vmem_limit_bytes=vmem_limit,
            ),
        )

    # Prefer CORE_PARALLEL so v7x (2 TCs/chip) actually splits the row axis across
    # cores; plain "parallel" is a near-no-op for codegen. Fall back if this
    # jax/Mosaic build or the current chip rejects it (single-TC chips are fine
    # either way — the fallback keeps the kernel identical to the validated path).
    core_parallel = getattr(pltpu, "CORE_PARALLEL", None)
    if core_parallel is not None:
        try:
            out = build((core_parallel,))(x2, g2, b2)
            return out.reshape(orig_shape)
        except Exception:
            pass
    out = build(("parallel",))(x2, g2, b2)
    return out.reshape(orig_shape)


def _layernorm_jnp(x, gamma, beta):
    """Plain-JAX LN for tiny inputs (lets XLA fuse it into `fn`; avoids launch cost)."""
    mu = jnp.mean(x, axis=-1, keepdims=True)
    var = jnp.mean((x - mu) ** 2, axis=-1, keepdims=True)
    return ((x - mu) * jax.lax.rsqrt(var + EPS)) * gamma + beta


class PreNormPallas:
    """JAX/Pallas equivalent of the PyTorch PreNorm module.

    norm / norm_context are Pallas LayerNorm kernels; `fn` is an arbitrary
    wrapped function (plain JAX glue), exactly as in the original module.

    `min_pallas_elems` (default 0 = always use the Pallas kernel): for production
    use with KB-scale activations, set it so tiny tensors take the fused-XLA jnp
    path instead of paying a standalone pallas_call launch.
    """

    def __init__(self, dim, fn, context_dim=None, dtype=jnp.float32,
                 min_pallas_elems=0):
        self.fn = fn
        self.min_pallas_elems = min_pallas_elems
        # nn.LayerNorm default init: weight = 1, bias = 0 (deterministic)
        self.norm_gamma = jnp.ones((dim,), dtype)
        self.norm_beta = jnp.zeros((dim,), dtype)
        if context_dim is not None:
            self.ctx_gamma = jnp.ones((context_dim,), dtype)
            self.ctx_beta = jnp.zeros((context_dim,), dtype)
        else:
            self.ctx_gamma = None
            self.ctx_beta = None

    def _ln(self, v, gamma, beta):
        if v.size < self.min_pallas_elems:
            return _layernorm_jnp(v, gamma, beta)
        return layernorm_pallas(v, gamma, beta)

    def __call__(self, x, **kwargs):
        x = self._ln(x, self.norm_gamma, self.norm_beta)
        if self.ctx_gamma is not None:
            context = kwargs["context"]
            normed_context = self._ln(context, self.ctx_gamma, self.ctx_beta)
            kwargs = dict(kwargs, context=normed_context)
        return self.fn(x, **kwargs)


if __name__ == "__main__":
    key = jax.random.PRNGKey(0)
    B, N, D = 2, 8, 128       # x: (batch, seq, dim)
    M, Dc = 4, 256            # context: (batch, ctx_seq, context_dim)

    kx, kc, kw1, kw2, kr, kb = jax.random.split(key, 6)
    x = jax.random.normal(kx, (B, N, D), jnp.float32)
    context = jax.random.normal(kc, (B, M, Dc), jnp.float32)

    # Deterministic wrapped `fn` (plain-JAX glue), consuming both the normalized x
    # and normalized context, standing in for the attention block PreNorm wraps.
    Wx = jax.random.normal(kw1, (D, D), jnp.float32) * 0.02
    Wc = jax.random.normal(kw2, (Dc, D), jnp.float32) * 0.02

    def fn(x_normed, context=None):
        out = x_normed @ Wx
        if context is not None:
            out = out + jnp.mean(context @ Wc, axis=1, keepdims=True)
        return out

    prenorm = PreNormPallas(D, fn, context_dim=Dc)
    out = prenorm(x, context=context)
    jax.block_until_ready(out)

    # Pure-JAX LayerNorm reference (gamma=1, beta=0).
    def ln_ref(v):
        mu = jnp.mean(v, axis=-1, keepdims=True)
        var = jnp.mean((v - mu) ** 2, axis=-1, keepdims=True)
        return (v - mu) * jax.lax.rsqrt(var + EPS)

    ref_out = fn(ln_ref(x), context=ln_ref(context))
    assert jnp.allclose(out, ref_out, atol=1e-4, rtol=1e-4)

    # Ragged row count (R=15, not a multiple of the 8-row packing / row tile):
    # exercises the cdiv grid + partial-block masking path.
    xr = jax.random.normal(kr, (3, 5, D), jnp.float32)
    out_r = layernorm_pallas(xr, jnp.ones((D,), jnp.float32), jnp.zeros((D,), jnp.float32))
    jax.block_until_ready(out_r)
    assert jnp.allclose(out_r, ln_ref(xr), atol=1e-4, rtol=1e-4)

    # Multi-block grid with a partial last tile (grid = 9 steps of 256 rows):
    # exercises the CORE_PARALLEL / multi-core split path with a ragged tail.
    xb = jax.random.normal(kb, (1, 2055, D), jnp.float32)
    out_b = layernorm_pallas(xb, jnp.ones((D,), jnp.float32), jnp.zeros((D,), jnp.float32),
                             row_tile=256)
    jax.block_until_ready(out_b)
    assert jnp.allclose(out_b, ln_ref(xb), atol=1e-4, rtol=1e-4)

    print("KERNEL_OK")
</pallas_src>

<mosaic_0001>
module attributes {stable_mosaic.version = 11 : i64} {
  func.func @_layernorm_kernel(%arg0: i32, %arg1: memref<16x128xf32, #tpu.memory_space<vmem>>, %arg2: memref<1x128xf32, #tpu.memory_space<vmem>>, %arg3: memref<1x128xf32, #tpu.memory_space<vmem>>, %arg4: memref<16x128xf32, #tpu.memory_space<vmem>>) attributes {dimension_semantics = [#tpu.dimension_semantics<core_parallel>], iteration_bounds = array<i64: 1>, scalar_prefetch = 0 : i64, scratch_operands = 0 : i64, tpu.core_type = #tpu.core_type<tc>, window_params = [{transform_indices = @transform_0, window_bounds = array<i64: 16, 128>}, {pipeline_mode = #tpu.pipeline_mode<synchronous>, transform_indices = @transform_1, window_bounds = array<i64: 1, 128>}, {pipeline_mode = #tpu.pipeline_mode<synchronous>, transform_indices = @transform_2, window_bounds = array<i64: 1, 128>}, {transform_indices = @transform_3, window_bounds = array<i64: 16, 128>}]} {
    %c0 = arith.constant 0 : index
    %c0_0 = arith.constant 0 : index
    %0 = vector.load %arg1[%c0, %c0_0] : memref<16x128xf32, #tpu.memory_space<vmem>>, vector<16x128xf32>
    %cst = arith.constant dense<0.000000e+00> : vector<16xf32>
    %1 = vector.multi_reduction <add>, %0, %cst [1] : vector<16x128xf32> to vector<16xf32>
    %2 = vector.shape_cast %1 : vector<16xf32> to vector<16x1xf32>
    %cst_1 = arith.constant 1.280000e+02 : f32
    %3 = vector.broadcast %cst_1 : f32 to vector<16x1xf32>
    %4 = arith.divf %2, %3 : vector<16x1xf32>
    %5 = vector.broadcast %4 : vector<16x1xf32> to vector<16x128xf32>
    %6 = arith.subf %0, %5 : vector<16x128xf32>
    %7 = arith.mulf %6, %6 : vector<16x128xf32>
    %cst_2 = arith.constant dense<0.000000e+00> : vector<16xf32>
    %8 = vector.multi_reduction <add>, %7, %cst_2 [1] : vector<16x128xf32> to vector<16xf32>
    %9 = vector.shape_cast %8 : vector<16xf32> to vector<16x1xf32>
    %cst_3 = arith.constant 1.280000e+02 : f32
    %10 = vector.broadcast %cst_3 : f32 to vector<16x1xf32>
    %11 = arith.divf %9, %10 : vector<16x1xf32>
    %cst_4 = arith.constant 9.99999974E-6 : f32
    %12 = vector.broadcast %cst_4 : f32 to vector<16x1xf32>
    %13 = arith.addf %11, %12 : vector<16x1xf32>
    %14 = math.rsqrt %13 : vector<16x1xf32>
    %c0_5 = arith.constant 0 : index
    %c0_6 = arith.constant 0 : index
    %15 = vector.load %arg2[%c0_5, %c0_6] : memref<1x128xf32, #tpu.memory_space<vmem>>, vector<1x128xf32>
    %16 = vector.broadcast %14 : vector<16x1xf32> to vector<16x128xf32>
    %17 = vector.broadcast %15 : vector<1x128xf32> to vector<16x128xf32>
    %18 = arith.mulf %16, %17 : vector<16x128xf32>
    %19 = arith.mulf %6, %18 : vector<16x128xf32>
    %c0_7 = arith.constant 0 : index
    %c0_8 = arith.constant 0 : index
    %20 = vector.load %arg3[%c0_7, %c0_8] : memref<1x128xf32, #tpu.memory_space<vmem>>, vector<1x128xf32>
    %21 = vector.broadcast %20 : vector<1x128xf32> to vector<16x128xf32>
    %22 = arith.addf %19, %21 : vector<16x128xf32>
    %c0_9 = arith.constant 0 : index
    %c0_10 = arith.constant 0 : index
    %23 = vector.load %arg4[%c0_9, %c0_10] : memref<16x128xf32, #tpu.memory_space<vmem>>, vector<16x128xf32>
    tpu.vector_store %arg4[%c0_9, %c0_10], %22 {strides = array<i32>} : memref<16x128xf32, #tpu.memory_space<vmem>>, vector<16x128xf32>,
    return
  }
  func.func @transform_0(%arg0: i32) -> (i32, i32) {
    %c0_i32 = arith.constant 0 : i32
    %c0_i32_0 = arith.constant 0 : i32
    return %arg0, %c0_i32 : i32, i32
  }
  func.func @transform_1(%arg0: i32) -> (i32, i32) {
    %c0_i32 = arith.constant 0 : i32
    %c0_i32_0 = arith.constant 0 : i32
    %c0_i32_1 = arith.constant 0 : i32
    return %c0_i32, %c0_i32_0 : i32, i32
  }
  func.func @transform_2(%arg0: i32) -> (i32, i32) {
    %c0_i32 = arith.constant 0 : i32
    %c0_i32_0 = arith.constant 0 : i32
    %c0_i32_1 = arith.constant 0 : i32
    return %c0_i32, %c0_i32_0 : i32, i32
  }
  func.func @transform_3(%arg0: i32) -> (i32, i32) {
    %c0_i32 = arith.constant 0 : i32
    %c0_i32_0 = arith.constant 0 : i32
    return %arg0, %c0_i32 : i32, i32
  }
}

module attributes {stable_mosaic.version = 11 : i64} {
  func.func @_layernorm_kernel(%arg0: i32, %arg1: memref<16x128xf32, #tpu.memory_space<vmem>>, %arg2: memref<1x128xf32, #tpu.memory_space<vmem>>, %arg3: memref<1x128xf32, #tpu.memory_space<vmem>>, %arg4: memref<16x128xf32, #tpu.memory_space<vmem>>) attributes {dimension_semantics = [#tpu.dimension_semantics<parallel>], iteration_bounds = array<i64: 1>, scalar_prefetch = 0 : i64, scratch_operands = 0 : i64, tpu.core_type = #tpu.core_type<tc>, window_params = [{transform_indices = @transform_0, window_bounds = array<i64: 16, 128>}, {pipeline_mode = #tpu.pipeline_mode<synchronous>, transform_indices = @transform_1, window_bounds = array<i64: 1, 128>}, {pipeline_mode = #tpu.pipeline_mode<synchronous>, transform_indices = @transform_2, window_bounds = array<i64: 1, 128>}, {transform_indices = @transform_3, window_bounds = array<i64: 16, 128>}]} {
    %c0 = arith.constant 0 : index
    %c0_0 = arith.constant 0 : index
    %0 = vector.load %arg1[%c0, %c0_0] : memref<16x128xf32, #tpu.memory_space<vmem>>, vector<16x128xf32>
    %cst = arith.constant dense<0.000000e+00> : vector<16xf32>
    %1 = vector.multi_reduction <add>, %0, %cst [1] : vector<16x128xf32> to vector<16xf32>
    %2 = vector.shape_cast %1 : vector<16xf32> to vector<16x1xf32>
    %cst_1 = arith.constant 1.280000e+02 : f32
    %3 = vector.broadcast %cst_1 : f32 to vector<16x1xf32>
    %4 = arith.divf %2, %3 : vector<16x1xf32>
    %5 = vector.broadcast %4 : vector<16x1xf32> to vector<16x128xf32>
    %6 = arith.subf %0, %5 : vector<16x128xf32>
    %7 = arith.mulf %6, %6 : vector<16x128xf32>
    %cst_2 = arith.constant dense<0.000000e+00> : vector<16xf32>
    %8 = vector.multi_reduction <add>, %7, %cst_2 [1] : vector<16x128xf32> to vector<16xf32>
    %9 = vector.shape_cast %8 : vector<16xf32> to vector<16x1xf32>
    %cst_3 = arith.constant 1.280000e+02 : f32
    %10 = vector.broadcast %cst_3 : f32 to vector<16x1xf32>
    %11 = arith.divf %9, %10 : vector<16x1xf32>
    %cst_4 = arith.constant 9.99999974E-6 : f32
    %12 = vector.broadcast %cst_4 : f32 to vector<16x1xf32>
    %13 = arith.addf %11, %12 : vector<16x1xf32>
    %14 = math.rsqrt %13 : vector<16x1xf32>
    %c0_5 = arith.constant 0 : index
    %c0_6 = arith.constant 0 : index
    %15 = vector.load %arg2[%c0_5, %c0_6] : memref<1x128xf32, #tpu.memory_space<vmem>>, vector<1x128xf32>
    %16 = vector.broadcast %14 : vector<16x1xf32> to vector<16x128xf32>
    %17 = vector.broadcast %15 : vector<1x128xf32> to vector<16x128xf32>
    %18 = arith.mulf %16, %17 : vector<16x128xf32>
    %19 = arith.mulf %6, %18 : vector<16x128xf32>
    %c0_7 = arith.constant 0 : index
    %c0_8 = arith.constant 0 : index
    %20 = vector.load %arg3[%c0_7, %c0_8] : memref<1x128xf32, #tpu.memory_space<vmem>>, vector<1x128xf32>
    %21 = vector.broadcast %20 : vector<1x128xf32> to vector<16x128xf32>
    %22 = arith.addf %19, %21 : vector<16x128xf32>
    %c0_9 = arith.constant 0 : index
    %c0_10 = arith.constant 0 : index
    %23 = vector.load %arg4[%c0_9, %c0_10] : memref<16x128xf32, #tpu.memory_space<vmem>>, vector<16x128xf32>
    tpu.vector_store %arg4[%c0_9, %c0_10], %22 {strides = array<i32>} : memref<16x128xf32, #tpu.memory_space<vmem>>, vector<16x128xf32>,
    return
  }
  func.func @transform_0(%arg0: i32) -> (i32, i32) {
    %c0_i32 = arith.constant 0 : i32
    %c0_i32_0 = arith.constant 0 : i32
    return %arg0, %c0_i32 : i32, i32
  }
  func.func @transform_1(%arg0: i32) -> (i32, i32) {
    %c0_i32 = arith.constant 0 : i32
    %c0_i32_0 = arith.constant 0 : i32
    %c0_i32_1 = arith.constant 0 : i32
    return %c0_i32, %c0_i32_0 : i32, i32
  }
  func.func @transform_2(%arg0: i32) -> (i32, i32) {
    %c0_i32 = arith.constant 0 : i32
    %c0_i32_0 = arith.constant 0 : i32
    %c0_i32_1 = arith.constant 0 : i32
    return %c0_i32, %c0_i32_0 : i32, i32
  }
  func.func @transform_3(%arg0: i32) -> (i32, i32) {
    %c0_i32 = arith.constant 0 : i32
    %c0_i32_0 = arith.constant 0 : i32
    return %arg0, %c0_i32 : i32, i32
  }
}

</mosaic_0001>

<llo_original>
// kernel: tpu_custom_call.1
$region0: #{tpu_custom_call.1}
  #allocation0 [shape = 'u32[]', space=smem, size = 0x4, offset = 0x4, fixed_abs, tag = 'smem constant byte address 0x4 - core index']
  #allocation1 [shape = 'u32[144,128]{1,0:T(1,128)}', space=vmem, size = 0x12000, scoped, tag = 'internal scratch']
  %s0 = inlined_call_operand.hbm [shape: f32[16,128], index: 0, kind: input, shape index: {}]
  %s1 = inlined_call_operand.vmem [shape: f32[1,128], index: 1, kind: input, shape index: {}]
  %s2 = inlined_call_operand.vmem [shape: f32[1,128], index: 2, kind: input, shape index: {}]
  %s3 = inlined_call_operand.hbm [shape: f32[16,128], index: 3, kind: output, shape index: {}]
  %s4 = sld [smem:[#allocation0]]
  $region26: #{tpu_custom_call.1} parent=0
    _
  %s6 = ssub.s32 1, %s4
  %s7 = scalar_select 0, %s6, %s4
  $region1: #{tpu_custom_call.1} parent=0
    #allocation2 [shape = 'u8[8192]{0}', space=vmem, size = 0x2000, scoped, tag = 'input window, operand 0, single buffered']
    #allocation3 [shape = 's32[1]{0}', space=sflag, size = 0x4, scoped, tag = 'scoped memory for tpu_custom_call.1']
    #allocation4 [shape = 's32[1]{0}', space=sflag, size = 0x4, scoped, tag = 'scoped memory for tpu_custom_call.1']
    #allocation5 [shape = 'u8[8192]{0}', space=vmem, size = 0x2000, scoped, tag = 'output window, operand 0, single buffered']
    %8 = vsyncpa [#allocation3], 0
    %9 = vsyncpa [#allocation4], 0
    // Predicated region
    $region2: #{tpu_custom_call.1} parent=1 // pred_check
      _
    $region3: #{tpu_custom_call.1} parent=1 // pred_check_branch
      %11 = sbr.rel (0) target = $region5
    $region4: #{tpu_custom_call.1} parent=1 // pred_region
      %s12 = smul.u32 2, %s7
      %s14 = ssub.s32 256, 256
      %15 = vsyncadd [#allocation3], %s14
      %s16 = smul.addr %s12, 128
      %s17 = scalar_lea.hbm %s0, %s16
      %s18 = sshll.u32 [#allocation2], 4
      %s19 = int_to_ptr.vmem [resolvable:$true] %s18
      %24 = dma.hbm_to_vmem [thread:$0]  %s17, 256, %s19, [#allocation3], 128, 128, 8
    $region5: #{tpu_custom_call.1} parent=1 // pred_fallthru
      _
    // Predicated region
    $region6: #{tpu_custom_call.1} parent=1 // pred_check
      _
    $region7: #{tpu_custom_call.1} parent=1 // pred_check_branch
      %26 = sbr.rel (0) target = $region9
    $region8: #{tpu_custom_call.1} parent=1 // pred_region
      _
    $region9: #{tpu_custom_call.1} parent=1 // pred_fallthru
      _
    // Predicated region
    $region10: #{tpu_custom_call.1} parent=1 // pred_check
      _
    $region11: #{tpu_custom_call.1} parent=1 // pred_check_branch
      %28 = sbr.rel (0) target = $region13
    $region12: #{tpu_custom_call.1} parent=1 // pred_region
      _
    $region13: #{tpu_custom_call.1} parent=1 // pred_fallthru
      _
    // Predicated region
    $region14: #{tpu_custom_call.1} parent=1 // pred_check
      _
    $region15: #{tpu_custom_call.1} parent=1 // pred_check_branch
      %30 = sbr.rel (0) target = $region17
    $region16: #{tpu_custom_call.1} parent=1 // pred_region
      %31 = dma.done [#allocation3], 256
    $region17: #{tpu_custom_call.1} parent=1 // pred_fallthru
      _
    %s32 = smul.u32 2, %s7
    %s33 = smul.u32 2, %s7
    %v34 = vld [vmem:[#allocation2] sm:$0xff]
    %v35 = vld [vmem:[#allocation2 + $0x8] sm:$0xff]
    %36 = vadd.xlane.f32.xlu0 %v34
    %v37 = vpop.xlane.xlu0 %36
    %38 = vadd.xlane.f32.xlu0 %v35
    %v39 = vpop.xlane.xlu0 %38
    %v40 = vrcp.pop 128.0
    %v41 = vmul.f32 %v37, %v40
    %v42 = vmul.f32 %v39, %v40
    %v43 = vsub.f32 %v34, %v41
    %v44 = vsub.f32 %v35, %v42
    %v45 = vmul.f32 %v43, %v43
    %v46 = vmul.f32 %v44, %v44
    %47 = vadd.xlane.f32.xlu0 %v45
    %v48 = vpop.xlane.xlu0 %47
    %49 = vadd.xlane.f32.xlu0 %v46
    %v50 = vpop.xlane.xlu0 %49
    %v51 = vmul.f32 %v48, %v40
    %v52 = vmul.f32 %v50, %v40
    %v53 = vadd.f32 %v51, 1e-05
    %v54 = vadd.f32 %v52, 1e-05
    %v55 = vrsqrt.pop %v53
    %v56 = vrsqrt.pop %v54
    %v57 = vld [vmem:[%s1] sm:$0x1]
    %v59 = vlaneseq
    %v60 = vshrl.u32 %v59, 7
    %v61 = vsub.s32 0, %v60
    %v62 = vrot.slane %v57, %v61
    %v64 = vmul.f32 %v55, %v62
    %v65 = vmul.f32 %v56, %v62
    %v66 = vmul.f32 %v43, %v64
    %v67 = vmul.f32 %v44, %v65
    %v68 = vld [vmem:[%s2] sm:$0x1]
    %v70 = vlaneseq
    %v71 = vshrl.u32 %v70, 7
    %v72 = vsub.s32 0, %v71
    %v73 = vrot.slane %v68, %v72
    %v75 = vadd.f32 %v66, %v73
    %v76 = vadd.f32 %v67, %v73
    %77 = vst [vmem:[#allocation5] sm:$0xff] %v75
    %78 = vst [vmem:[#allocation5 + $0x8] sm:$0xff] %v76
    // Predicated region
    $region18: #{tpu_custom_call.1} parent=1 // pred_check
      _
    $region19: #{tpu_custom_call.1} parent=1 // pred_check_branch
      %80 = sbr.rel (0) target = $region21
    $region20: #{tpu_custom_call.1} parent=1 // pred_region
      %s81 = smul.u32 2, %s7
      %s83 = ssub.s32 256, 256
      %84 = vsyncadd [#allocation4], %s83
      %s85 = smul.addr %s81, 128
      %s86 = scalar_lea.hbm %s3, %s85
      %s87 = sshll.u32 [#allocation5], 4
      %s88 = int_to_ptr.vmem [resolvable:$true] %s87
      %93 = dma.vmem_to_hbm [thread:$0]  %s88, 256, %s86, [#allocation4], 128, 128, 8
    $region21: #{tpu_custom_call.1} parent=1 // pred_fallthru
      _
    // Predicated region
    $region22: #{tpu_custom_call.1} parent=1 // pred_check
      _
    $region23: #{tpu_custom_call.1} parent=1 // pred_check_branch
      %95 = sbr.rel (0) target = $region25
    $region24: #{tpu_custom_call.1} parent=1 // pred_region
      %96 = dma.done [#allocation4], 256
    $region25: #{tpu_custom_call.1} parent=1 // pred_fallthru
      _
    %97 = vsyncpa [#allocation3], 1
    %98 = vsyncpa [#allocation4], 1

// kernel: tpu_custom_call.1
$region0: #{tpu_custom_call.1}
  #allocation0 [shape = 'u32[]', space=smem, size = 0x4, offset = 0x4, fixed_abs, tag = 'smem constant byte address 0x4 - core index']
  #allocation1 [shape = 'u32[144,128]{1,0:T(1,128)}', space=vmem, size = 0x12000, scoped, tag = 'internal scratch']
  %s0 = inlined_call_operand.hbm [shape: f32[16,128], index: 0, kind: input, shape index: {}]
  %s1 = inlined_call_operand.vmem [shape: f32[1,128], index: 1, kind: input, shape index: {}]
  %s2 = inlined_call_operand.vmem [shape: f32[1,128], index: 2, kind: input, shape index: {}]
  %s3 = inlined_call_operand.hbm [shape: f32[16,128], index: 3, kind: output, shape index: {}]
  %s4 = sld [smem:[#allocation0]]
  $region26: #{tpu_custom_call.1} parent=0
    _
  %s6 = ssub.s32 1, %s4
  %s7 = scalar_select 0, %s6, %s4
  $region1: #{tpu_custom_call.1} parent=0
    #allocation2 [shape = 'u8[8192]{0}', space=vmem, size = 0x2000, scoped, tag = 'input window, operand 0, single buffered']
    #allocation3 [shape = 's32[1]{0}', space=sflag, size = 0x4, scoped, tag = 'scoped memory for tpu_custom_call.1']
    #allocation4 [shape = 's32[1]{0}', space=sflag, size = 0x4, scoped, tag = 'scoped memory for tpu_custom_call.1']
    #allocation5 [shape = 'u8[8192]{0}', space=vmem, size = 0x2000, scoped, tag = 'output window, operand 0, single buffered']
    %8 = vsyncpa [#allocation3], 0
    %9 = vsyncpa [#allocation4], 0
    // Predicated region
    $region2: #{tpu_custom_call.1} parent=1 // pred_check
      _
    $region3: #{tpu_custom_call.1} parent=1 // pred_check_branch
      %11 = sbr.rel (0) target = $region5
    $region4: #{tpu_custom_call.1} parent=1 // pred_region
      %s13 = ssub.s32 256, 256
      %14 = vsyncadd [#allocation3], %s13
      %s15 = sshll.u32 [#allocation2], 4
      %s16 = int_to_ptr.vmem [resolvable:$true] %s15
      %21 = dma.hbm_to_vmem [thread:$0]  %s0, 256, %s16, [#allocation3], 128, 128, 8
    $region5: #{tpu_custom_call.1} parent=1 // pred_fallthru
      _
    // Predicated region
    $region6: #{tpu_custom_call.1} parent=1 // pred_check
      _
    $region7: #{tpu_custom_call.1} parent=1 // pred_check_branch
      %23 = sbr.rel (0) target = $region9
    $region8: #{tpu_custom_call.1} parent=1 // pred_region
      _
    $region9: #{tpu_custom_call.1} parent=1 // pred_fallthru
      _
    // Predicated region
    $region10: #{tpu_custom_call.1} parent=1 // pred_check
      _
    $region11: #{tpu_custom_call.1} parent=1 // pred_check_branch
      %25 = sbr.rel (0) target = $region13
    $region12: #{tpu_custom_call.1} parent=1 // pred_region
      _
    $region13: #{tpu_custom_call.1} parent=1 // pred_fallthru
      _
    // Predicated region
    $region14: #{tpu_custom_call.1} parent=1 // pred_check
      _
    $region15: #{tpu_custom_call.1} parent=1 // pred_check_branch
      %27 = sbr.rel (0) target = $region17
    $region16: #{tpu_custom_call.1} parent=1 // pred_region
      %28 = dma.done [#allocation3], 256
    $region17: #{tpu_custom_call.1} parent=1 // pred_fallthru
      _
    %v29 = vld [vmem:[#allocation2] sm:$0xff]
    %v30 = vld [vmem:[#allocation2 + $0x8] sm:$0xff]
    %31 = vadd.xlane.f32.xlu0 %v29
    %v32 = vpop.xlane.xlu0 %31
    %33 = vadd.xlane.f32.xlu0 %v30
    %v34 = vpop.xlane.xlu0 %33
    %v35 = vrcp.pop 128.0
    %v36 = vmul.f32 %v32, %v35
    %v37 = vmul.f32 %v34, %v35
    %v38 = vsub.f32 %v29, %v36
    %v39 = vsub.f32 %v30, %v37
    %v40 = vmul.f32 %v38, %v38
    %v41 = vmul.f32 %v39, %v39
    %42 = vadd.xlane.f32.xlu0 %v40
    %v43 = vpop.xlane.xlu0 %42
    %44 = vadd.xlane.f32.xlu0 %v41
    %v45 = vpop.xlane.xlu0 %44
    %v46 = vmul.f32 %v43, %v35
    %v47 = vmul.f32 %v45, %v35
    %v48 = vadd.f32 %v46, 1e-05
    %v49 = vadd.f32 %v47, 1e-05
    %v50 = vrsqrt.pop %v48
    %v51 = vrsqrt.pop %v49
    %v52 = vld [vmem:[%s1] sm:$0x1]
    %v54 = vlaneseq
    %v55 = vshrl.u32 %v54, 7
    %v56 = vsub.s32 0, %v55
    %v57 = vrot.slane %v52, %v56
    %v59 = vmul.f32 %v50, %v57
    %v60 = vmul.f32 %v51, %v57
    %v61 = vmul.f32 %v38, %v59
    %v62 = vmul.f32 %v39, %v60
    %v63 = vld [vmem:[%s2] sm:$0x1]
    %v65 = vlaneseq
    %v66 = vshrl.u32 %v65, 7
    %v67 = vsub.s32 0, %v66
    %v68 = vrot.slane %v63, %v67
    %v70 = vadd.f32 %v61, %v68
    %v71 = vadd.f32 %v62, %v68
    %72 = vst [vmem:[#allocation5] sm:$0xff] %v70
    %73 = vst [vmem:[#allocation5 + $0x8] sm:$0xff] %v71
    // Predicated region
    $region18: #{tpu_custom_call.1} parent=1 // pred_check
      _
    $region19: #{tpu_custom_call.1} parent=1 // pred_check_branch
      %75 = sbr.rel (0) target = $region21
    $region20: #{tpu_custom_call.1} parent=1 // pred_region
      %s77 = ssub.s32 256, 256
      %78 = vsyncadd [#allocation4], %s77
      %s79 = sshll.u32 [#allocation5], 4
      %s80 = int_to_ptr.vmem [resolvable:$true] %s79
      %85 = dma.vmem_to_hbm [thread:$0]  %s80, 256, %s3, [#allocation4], 128, 128, 8
    $region21: #{tpu_custom_call.1} parent=1 // pred_fallthru
      _
    // Predicated region
    $region22: #{tpu_custom_call.1} parent=1 // pred_check
      _
    $region23: #{tpu_custom_call.1} parent=1 // pred_check_branch
      %87 = sbr.rel (0) target = $region25
    $region24: #{tpu_custom_call.1} parent=1 // pred_region
      %88 = dma.done [#allocation4], 256
    $region25: #{tpu_custom_call.1} parent=1 // pred_fallthru
      _
    %89 = vsyncpa [#allocation3], 1
    %90 = vsyncpa [#allocation4], 1

</llo_original>
